<compile_context>
chip_gen: v5e
topology: v5e:2x2
jax: 0.10.0
libtpu: 0.0.40
codegen_flags: <defaults>
</compile_context>

<pallas_src>
import jax
import jax.numpy as jnp
import numpy as np
from jax.experimental import pallas as pl
from jax.experimental.pallas import tpu as pltpu


def _round_up(x: int, m: int) -> int:
    return ((x + m - 1) // m) * m


# ----------------------------------------------------------------------------
# Fused Pallas kernel:
#   out_lb = relu(C_lb) @ Lo + min(C_lb,0) @ Hi
#   out_ub = relu(C_ub) @ Hi + min(C_ub,0) @ Lo
# Tiled over (M, N, K); K is the reduction axis with f32 VMEM accumulators.
# ----------------------------------------------------------------------------
def _dp_resolve_fused_kernel(clb_ref, cub_ref, lo_ref, hi_ref,
                             olb_ref, oub_ref, acc_lb, acc_ub):
    k = pl.program_id(2)

    @pl.when(k == 0)
    def _():
        acc_lb[...] = jnp.zeros_like(acc_lb)
        acc_ub[...] = jnp.zeros_like(acc_ub)

    clb = clb_ref[...]
    cub = cub_ref[...]
    lo = lo_ref[...]
    hi = hi_ref[...]

    # Shared RHS: [Lo; Hi] along K.  Single MXU contraction per output.
    lohi = jnp.concatenate([lo, hi], axis=0)                       # (2*tk, tn)

    lhs_lb = jnp.concatenate(
        [jnp.maximum(clb, 0.0), jnp.minimum(clb, 0.0)], axis=1)    # (tm, 2*tk)
    lhs_ub = jnp.concatenate(
        [jnp.minimum(cub, 0.0), jnp.maximum(cub, 0.0)], axis=1)    # (tm, 2*tk)

    acc_lb[...] += jnp.dot(lhs_lb, lohi, preferred_element_type=jnp.float32)
    acc_ub[...] += jnp.dot(lhs_ub, lohi, preferred_element_type=jnp.float32)

    @pl.when(k == pl.num_programs(2) - 1)
    def _():
        olb_ref[...] = acc_lb[...].astype(olb_ref.dtype)
        oub_ref[...] = acc_ub[...].astype(oub_ref.dtype)


def dp_resolve_fused(c_lb, c_ub, lo, hi):
    """Fused lower/upper DeepPoly back-substitution step (one pallas_call)."""
    c_lb = c_lb.astype(jnp.float32)
    c_ub = c_ub.astype(jnp.float32)
    lo = lo.astype(jnp.float32)
    hi = hi.astype(jnp.float32)

    M, K = c_lb.shape
    K2, N = lo.shape
    assert c_ub.shape == (M, K) and hi.shape == (K2, N) and K == K2

    # (8,128)-aligned tiles, sized conservatively for v7x's 64 MiB VMEM
    # (footprint here is a few MiB) while still saturating v5e/v6e.
    tm = min(256, _round_up(M, 8))
    tn = min(256, _round_up(N, 128))
    tk = min(512, _round_up(K, 128))
    Mp, Np, Kp = _round_up(M, tm), _round_up(N, tn), _round_up(K, tk)

    def pad2(a, r, c):
        return jnp.pad(a, ((0, r - a.shape[0]), (0, c - a.shape[1])))

    # Zero padding is sound: relu(0)=0 and min(0,0)=0, padded rows/cols of
    # Lo/Hi are zero, and padded output rows/cols are sliced off below.
    clb_p = pad2(c_lb, Mp, Kp)
    cub_p = pad2(c_ub, Mp, Kp)
    lo_p = pad2(lo, Kp, Np)
    hi_p = pad2(hi, Kp, Np)

    grid = (Mp // tm, Np // tn, Kp // tk)

    cost = pl.CostEstimate(
        flops=8 * Mp * Np * Kp,                     # 2 outputs x (pos+neg) MACs
        transcendentals=0,
        bytes_accessed=4 * (2 * Mp * Kp + 2 * Kp * Np + 2 * Mp * Np),
    )

    out_lb_p, out_ub_p = pl.pallas_call(
        _dp_resolve_fused_kernel,
        out_shape=(jax.ShapeDtypeStruct((Mp, Np), jnp.float32),
                   jax.ShapeDtypeStruct((Mp, Np), jnp.float32)),
        grid_spec=pltpu.PrefetchScalarGridSpec(
            num_scalar_prefetch=0,
            grid=grid,
            in_specs=[
                pl.BlockSpec((tm, tk), lambda i, j, k: (i, k)),   # C_lb
                pl.BlockSpec((tm, tk), lambda i, j, k: (i, k)),   # C_ub
                pl.BlockSpec((tk, tn), lambda i, j, k: (k, j)),   # Lo
                pl.BlockSpec((tk, tn), lambda i, j, k: (k, j)),   # Hi
            ],
            out_specs=[
                pl.BlockSpec((tm, tn), lambda i, j, k: (i, j)),   # out_lb
                pl.BlockSpec((tm, tn), lambda i, j, k: (i, j)),   # out_ub
            ],
            scratch_shapes=[pltpu.VMEM((tm, tn), jnp.float32),
                            pltpu.VMEM((tm, tn), jnp.float32)],
        ),
        compiler_params=pltpu.CompilerParams(
            dimension_semantics=("parallel", "parallel", "arbitrary"),
            vmem_limit_bytes=32 * 1024 * 1024,
        ),
        cost_estimate=cost,
    )(clb_p, cub_p, lo_p, hi_p)

    return out_lb_p[:M, :N], out_ub_p[:M, :N]


# ----------------------------------------------------------------------------
# Minimal DeepPoly abstract element (plain-JAX glue around the Pallas kernel)
# ----------------------------------------------------------------------------
class DeepPolyElement:
    def __init__(self, input_lb, input_ub, prior_slbs, prior_subs):
        self.input_lb = jnp.asarray(input_lb, jnp.float32)
        self.input_ub = jnp.asarray(input_ub, jnp.float32)
        self.prior_slbs = [jnp.asarray(a, jnp.float32) for a in prior_slbs]
        self.prior_subs = [jnp.asarray(a, jnp.float32) for a in prior_subs]
        # number of back-substitution steps: prior layers + the input layer
        self.layers = len(self.prior_slbs) + 1

        # Precompute the augmented substitution matrices once (instead of
        # rebuilding the constant row/column with jnp.concatenate per resolve).
        one = jnp.ones((1,), jnp.float32)
        self._aug_lo = [jnp.concatenate([self.input_lb, one])[:, None]]  # (n0+1, 1)
        self._aug_hi = [jnp.concatenate([self.input_ub, one])[:, None]]
        for slb, sub in zip(self.prior_slbs, self.prior_subs):
            unit = jnp.concatenate(
                [jnp.zeros((1, slb.shape[1] - 1), jnp.float32),
                 jnp.ones((1, 1), jnp.float32)], axis=1)
            self._aug_lo.append(jnp.concatenate([slb, unit], axis=0))
            self._aug_hi.append(jnp.concatenate([sub, unit], axis=0))

        self.lb = None
        self.ub = None
        self.slb = None
        self.sub = None
        self.is_spu = None

    def save(self):
        # Original implementation stores history for later layers; bookkeeping
        # only, no compute -> no-op here.
        pass

    def resolve_pair(self, c_lb, c_ub, layer):
        """Fused lower+upper resolve for one back-substitution layer."""
        lo = self._aug_lo[layer]
        hi = self._aug_hi[layer]
        out_lb, out_ub = dp_resolve_fused(c_lb, c_ub, lo, hi)
        if layer == 0:
            out_lb = out_lb[:, 0]   # concrete bound vectors
            out_ub = out_ub[:, 0]
        return out_lb, out_ub

    def resolve(self, constraints, layer, lower=True):
        # Compatibility with the original single-sided API (not used by the
        # fused forward path below).
        out_lb, out_ub = self.resolve_pair(constraints, constraints, layer)
        return out_lb if lower else out_ub


class DPLinear:
    """JAX/Pallas port of the PyTorch DPLinear module."""

    def __init__(self, weight, bias):
        self.weight = jnp.asarray(weight, jnp.float32)   # (out_features, in_features)
        self.bias = jnp.asarray(bias, jnp.float32)       # (out_features,)
        self.out_features, self.in_features = self.weight.shape

    def forward(self, x: DeepPolyElement) -> DeepPolyElement:
        x.save()
        init_slb = jnp.concatenate([self.weight, self.bias[:, None]], axis=1)
        x.lb = init_slb
        x.ub = init_slb
        x.slb = init_slb
        x.sub = init_slb
        # Same iteration order / semantics as the PyTorch module; the lower
        # and upper resolves of each step are fused into one Pallas call.
        for i in range(x.layers, 0, -1):
            x.lb, x.ub = x.resolve_pair(x.lb, x.ub, i - 1)
        x.is_spu = False
        return x


# ----------------------------------------------------------------------------
# Pure-JAX reference for the resolve hot path (to validate the kernel)
# ----------------------------------------------------------------------------
def _resolve_ref(C, lo, hi):
    pos = jnp.maximum(C, 0.0)
    neg = jnp.minimum(C, 0.0)
    return pos @ lo + neg @ hi


if __name__ == "__main__":
    key = jax.random.PRNGKey(0)
    k_w, k_b, k_ps, k_pd, k_x0, k_t1, k_t2, k_t3 = jax.random.split(key, 8)

    in_dim = 24          # network input dimension (layer 0)
    hidden = 32          # output dim of the single prior affine layer
    out_dim = 16         # this DPLinear's out_features

    # deterministic parameters for this DPLinear (hidden -> out_dim)
    weight = jax.random.normal(k_w, (out_dim, hidden), jnp.float32) * 0.3
    bias = jax.random.normal(k_b, (out_dim,), jnp.float32) * 0.1

    # prior layer's symbolic bounds (as if produced after a ReLU): (hidden, in_dim+1)
    prior_slb = jax.random.normal(k_ps, (hidden, in_dim + 1), jnp.float32) * 0.2
    prior_sub = prior_slb + jnp.abs(
        jax.random.normal(k_pd, (hidden, in_dim + 1), jnp.float32)) * 0.05

    # concrete input box
    x0 = jax.random.normal(k_x0, (in_dim,), jnp.float32)
    eps = 0.1
    input_lb = x0 - eps
    input_ub = x0 + eps

    x = DeepPolyElement(input_lb, input_ub, [prior_slb], [prior_sub])
    layer = DPLinear(weight, bias)

    out = layer.forward(x)
    jax.block_until_ready(out.lb)
    jax.block_until_ready(out.ub)

    # ---- reference check of the full back-substitution (pure JAX) ----------
    init_slb = jnp.concatenate([weight, bias[:, None]], axis=1)
    unit = jnp.concatenate(
        [jnp.zeros((1, in_dim), jnp.float32), jnp.ones((1, 1), jnp.float32)], axis=1)
    lo1 = jnp.concatenate([prior_slb, unit], axis=0)
    hi1 = jnp.concatenate([prior_sub, unit], axis=0)
    lb_sym = _resolve_ref(init_slb, lo1, hi1)
    ub_sym = _resolve_ref(init_slb, hi1, lo1)
    one = jnp.ones((1,), jnp.float32)
    lo0 = jnp.concatenate([input_lb, one])[:, None]
    hi0 = jnp.concatenate([input_ub, one])[:, None]
    lb_ref = _resolve_ref(lb_sym, lo0, hi0)[:, 0]
    ub_ref = _resolve_ref(ub_sym, hi0, lo0)[:, 0]

    assert out.lb.shape == (out_dim,) and out.ub.shape == (out_dim,)
    assert np.allclose(np.asarray(out.lb), np.asarray(lb_ref), rtol=1e-3, atol=1e-3)
    assert np.allclose(np.asarray(out.ub), np.asarray(ub_ref), rtol=1e-3, atol=1e-3)
    assert bool(np.all(np.asarray(out.ub) >= np.asarray(out.lb)))
    assert out.is_spu is False

    # ---- extra check: multi-tile grid (exercises K accumulation + M/N tiles)
    Mt, Kt, Nt = 272, 600, 333          # -> grid (2, 2, 2) after padding
    Ct_lb = jax.random.normal(k_t1, (Mt, Kt), jnp.float32) * 0.1
    Ct_ub = Ct_lb + jnp.abs(jax.random.normal(k_t2, (Mt, Kt), jnp.float32)) * 0.02
    Lot = jax.random.normal(k_t3, (Kt, Nt), jnp.float32) * 0.1
    Hit = Lot + 0.03
    o_lb, o_ub = dp_resolve_fused(Ct_lb, Ct_ub, Lot, Hit)
    jax.block_until_ready(o_lb)
    jax.block_until_ready(o_ub)
    r_lb = _resolve_ref(Ct_lb, Lot, Hit)
    r_ub = _resolve_ref(Ct_ub, Hit, Lot)
    assert np.allclose(np.asarray(o_lb), np.asarray(r_lb), rtol=1e-3, atol=1e-3)
    assert np.allclose(np.asarray(o_ub), np.asarray(r_ub), rtol=1e-3, atol=1e-3)

    print("KERNEL_OK")
</pallas_src>

<mosaic_0001>
module attributes {stable_mosaic.version = 11 : i64} {
  func.func @_dp_resolve_fused_kernel(%arg0: i32, %arg1: i32, %arg2: i32, %arg3: memref<16x128xf32, #tpu.memory_space<vmem>>, %arg4: memref<16x128xf32, #tpu.memory_space<vmem>>, %arg5: memref<128x128xf32, #tpu.memory_space<vmem>>, %arg6: memref<128x128xf32, #tpu.memory_space<vmem>>, %arg7: memref<16x128xf32, #tpu.memory_space<vmem>>, %arg8: memref<16x128xf32, #tpu.memory_space<vmem>>, %arg9: memref<16x128xf32, #tpu.memory_space<vmem>>, %arg10: memref<16x128xf32, #tpu.memory_space<vmem>>) attributes {dimension_semantics = [#tpu.dimension_semantics<parallel>, #tpu.dimension_semantics<parallel>, #tpu.dimension_semantics<arbitrary>], iteration_bounds = array<i64: 1, 1, 1>, scalar_prefetch = 0 : i64, scratch_operands = 2 : i64, tpu.core_type = #tpu.core_type<tc>, window_params = [{transform_indices = @transform_0, window_bounds = array<i64: 16, 128>}, {transform_indices = @transform_1, window_bounds = array<i64: 16, 128>}, {transform_indices = @transform_2, window_bounds = array<i64: 128, 128>}, {transform_indices = @transform_3, window_bounds = array<i64: 128, 128>}, {transform_indices = @transform_4, window_bounds = array<i64: 16, 128>}, {transform_indices = @transform_5, window_bounds = array<i64: 16, 128>}]} {
    %c0_i32 = arith.constant 0 : i32
    %0 = arith.cmpi eq, %arg2, %c0_i32 : i32
    %1 = arith.extui %0 : i1 to i32
    %c0_i32_0 = arith.constant 0 : i32
    %2 = arith.cmpi ne, %1, %c0_i32_0 : i32
    scf.if %2 {
      %cst_23 = arith.constant 0.000000e+00 : f32
      %29 = vector.broadcast %cst_23 : f32 to vector<16x128xf32>
      %c0_24 = arith.constant 0 : index
      %c0_25 = arith.constant 0 : index
      %30 = vector.load %arg9[%c0_24, %c0_25] : memref<16x128xf32, #tpu.memory_space<vmem>>, vector<16x128xf32>
      tpu.vector_store %arg9[%c0_24, %c0_25], %29 {strides = array<i32>} : memref<16x128xf32, #tpu.memory_space<vmem>>, vector<16x128xf32>,
      %cst_26 = arith.constant 0.000000e+00 : f32
      %31 = vector.broadcast %cst_26 : f32 to vector<16x128xf32>
      %c0_27 = arith.constant 0 : index
      %c0_28 = arith.constant 0 : index
      %32 = vector.load %arg10[%c0_27, %c0_28] : memref<16x128xf32, #tpu.memory_space<vmem>>, vector<16x128xf32>
      tpu.vector_store %arg10[%c0_27, %c0_28], %31 {strides = array<i32>} : memref<16x128xf32, #tpu.memory_space<vmem>>, vector<16x128xf32>,
    } else {
    }
    %c0 = arith.constant 0 : index
    %c0_1 = arith.constant 0 : index
    %3 = vector.load %arg3[%c0, %c0_1] : memref<16x128xf32, #tpu.memory_space<vmem>>, vector<16x128xf32>
    %c0_2 = arith.constant 0 : index
    %c0_3 = arith.constant 0 : index
    %4 = vector.load %arg4[%c0_2, %c0_3] : memref<16x128xf32, #tpu.memory_space<vmem>>, vector<16x128xf32>
    %c0_4 = arith.constant 0 : index
    %c0_5 = arith.constant 0 : index
    %5 = vector.load %arg5[%c0_4, %c0_5] : memref<128x128xf32, #tpu.memory_space<vmem>>, vector<128x128xf32>
    %c0_6 = arith.constant 0 : index
    %c0_7 = arith.constant 0 : index
    %6 = vector.load %arg6[%c0_6, %c0_7] : memref<128x128xf32, #tpu.memory_space<vmem>>, vector<128x128xf32>
    %7 = tpu.concatenate %5, %6 in 0 : vector<128x128xf32>, vector<128x128xf32> -> vector<256x128xf32>
    %cst = arith.constant 0.000000e+00 : f32
    %8 = vector.broadcast %cst : f32 to vector<16x128xf32>
    %9 = arith.maximumf %3, %8 : vector<16x128xf32>
    %cst_8 = arith.constant 0.000000e+00 : f32
    %10 = vector.broadcast %cst_8 : f32 to vector<16x128xf32>
    %11 = arith.minimumf %3, %10 : vector<16x128xf32>
    %12 = tpu.concatenate %9, %11 in 1 : vector<16x128xf32>, vector<16x128xf32> -> vector<16x256xf32>
    %cst_9 = arith.constant 0.000000e+00 : f32
    %13 = vector.broadcast %cst_9 : f32 to vector<16x128xf32>
    %14 = arith.minimumf %4, %13 : vector<16x128xf32>
    %cst_10 = arith.constant 0.000000e+00 : f32
    %15 = vector.broadcast %cst_10 : f32 to vector<16x128xf32>
    %16 = arith.maximumf %4, %15 : vector<16x128xf32>
    %17 = tpu.concatenate %14, %16 in 1 : vector<16x128xf32>, vector<16x128xf32> -> vector<16x256xf32>
    %c0_11 = arith.constant 0 : index
    %c0_12 = arith.constant 0 : index
    %18 = vector.load %arg9[%c0_11, %c0_12] : memref<16x128xf32, #tpu.memory_space<vmem>>, vector<16x128xf32>
    %cst_13 = arith.constant dense<0.000000e+00> : vector<16x128xf32>
    %19 = tpu.matmul %12, %7, %cst_13 {dimension_numbers = #tpu.dot_dimension_numbers<[1], [0], [0], [1], [0, 0, 1, 1], [], []>} : vector<16x256xf32>, vector<256x128xf32>, vector<16x128xf32> -> vector<16x128xf32>
    %20 = arith.addf %18, %19 : vector<16x128xf32>
    %c0_14 = arith.constant 0 : index
    %c0_15 = arith.constant 0 : index
    %21 = vector.load %arg9[%c0_14, %c0_15] : memref<16x128xf32, #tpu.memory_space<vmem>>, vector<16x128xf32>
    tpu.vector_store %arg9[%c0_14, %c0_15], %20 {strides = array<i32>} : memref<16x128xf32, #tpu.memory_space<vmem>>, vector<16x128xf32>,
    %c0_16 = arith.constant 0 : index
    %c0_17 = arith.constant 0 : index
    %22 = vector.load %arg10[%c0_16, %c0_17] : memref<16x128xf32, #tpu.memory_space<vmem>>, vector<16x128xf32>
    %cst_18 = arith.constant dense<0.000000e+00> : vector<16x128xf32>
    %23 = tpu.matmul %17, %7, %cst_18 {dimension_numbers = #tpu.dot_dimension_numbers<[1], [0], [0], [1], [0, 0, 1, 1], [], []>} : vector<16x256xf32>, vector<256x128xf32>, vector<16x128xf32> -> vector<16x128xf32>
    %24 = arith.addf %22, %23 : vector<16x128xf32>
    %c0_19 = arith.constant 0 : index
    %c0_20 = arith.constant 0 : index
    %25 = vector.load %arg10[%c0_19, %c0_20] : memref<16x128xf32, #tpu.memory_space<vmem>>, vector<16x128xf32>
    tpu.vector_store %arg10[%c0_19, %c0_20], %24 {strides = array<i32>} : memref<16x128xf32, #tpu.memory_space<vmem>>, vector<16x128xf32>,
    %c0_i32_21 = arith.constant 0 : i32
    %26 = arith.cmpi eq, %arg2, %c0_i32_21 : i32
    %27 = arith.extui %26 : i1 to i32
    %c0_i32_22 = arith.constant 0 : i32
    %28 = arith.cmpi ne, %27, %c0_i32_22 : i32
    scf.if %28 {
      %c0_23 = arith.constant 0 : index
      %c0_24 = arith.constant 0 : index
      %29 = vector.load %arg9[%c0_23, %c0_24] : memref<16x128xf32, #tpu.memory_space<vmem>>, vector<16x128xf32>
      %c0_25 = arith.constant 0 : index
      %c0_26 = arith.constant 0 : index
      %30 = vector.load %arg7[%c0_25, %c0_26] : memref<16x128xf32, #tpu.memory_space<vmem>>, vector<16x128xf32>
      tpu.vector_store %arg7[%c0_25, %c0_26], %29 {strides = array<i32>} : memref<16x128xf32, #tpu.memory_space<vmem>>, vector<16x128xf32>,
      %c0_27 = arith.constant 0 : index
      %c0_28 = arith.constant 0 : index
      %31 = vector.load %arg10[%c0_27, %c0_28] : memref<16x128xf32, #tpu.memory_space<vmem>>, vector<16x128xf32>
      %c0_29 = arith.constant 0 : index
      %c0_30 = arith.constant 0 : index
      %32 = vector.load %arg8[%c0_29, %c0_30] : memref<16x128xf32, #tpu.memory_space<vmem>>, vector<16x128xf32>
      tpu.vector_store %arg8[%c0_29, %c0_30], %31 {strides = array<i32>} : memref<16x128xf32, #tpu.memory_space<vmem>>, vector<16x128xf32>,
    } else {
    }
    return
  }
  func.func @transform_0(%arg0: i32, %arg1: i32, %arg2: i32) -> (i32, i32) {
    %c0_i32 = arith.constant 0 : i32
    return %arg0, %arg2 : i32, i32
  }
  func.func @transform_1(%arg0: i32, %arg1: i32, %arg2: i32) -> (i32, i32) {
    %c0_i32 = arith.constant 0 : i32
    return %arg0, %arg2 : i32, i32
  }
  func.func @transform_2(%arg0: i32, %arg1: i32, %arg2: i32) -> (i32, i32) {
    %c0_i32 = arith.constant 0 : i32
    return %arg2, %arg1 : i32, i32
  }
  func.func @transform_3(%arg0: i32, %arg1: i32, %arg2: i32) -> (i32, i32) {
    %c0_i32 = arith.constant 0 : i32
    return %arg2, %arg1 : i32, i32
  }
  func.func @transform_4(%arg0: i32, %arg1: i32, %arg2: i32) -> (i32, i32) {
    %c0_i32 = arith.constant 0 : i32
    return %arg0, %arg1 : i32, i32
  }
  func.func @transform_5(%arg0: i32, %arg1: i32, %arg2: i32) -> (i32, i32) {
    %c0_i32 = arith.constant 0 : i32
    return %arg0, %arg1 : i32, i32
  }
}

</mosaic_0001>

<llo_original>
// kernel: tpu_custom_call.1
$region0: #{tpu_custom_call.1}
  #allocation0 [shape = 'u32[]', space=smem, size = 0x4, offset = 0x4, fixed_abs, tag = 'smem constant byte address 0x4 - core index']
  #allocation1 [shape = 'u32[72,128]{1,0:T(1,128)}', space=vmem, size = 0x9000, scoped, tag = 'internal scratch']
  #allocation2 [shape = 'f32[16,128]{1,0:T(8,128)}', space=vmem, size = 0x2000, scoped, tag = 'scratch operand']
  #allocation3 [shape = 'f32[16,128]{1,0:T(8,128)}', space=vmem, size = 0x2000, scoped, tag = 'scratch operand']
  %s0 = inlined_call_operand.hbm [shape: f32[16,128], index: 0, kind: input, shape index: {}]
  %s1 = inlined_call_operand.hbm [shape: f32[16,128], index: 1, kind: input, shape index: {}]
  %s2 = inlined_call_operand.hbm [shape: f32[128,128], index: 2, kind: input, shape index: {}]
  %s3 = inlined_call_operand.hbm [shape: f32[128,128], index: 3, kind: input, shape index: {}]
  %s4 = inlined_call_operand.hbm [shape: f32[16,128], index: 4, kind: output, shape index: {0}]
  %s5 = inlined_call_operand.hbm [shape: f32[16,128], index: 5, kind: output, shape index: {1}]
  %6 = xla_tuple %s4, %s5
  %s7 = sld [smem:[#allocation0]]
  $region58: #{tpu_custom_call.1} parent=0
    _
  %s9 = ssub.s32 1, %s7
  %s10 = scalar_select 0, %s9, %s7
  $region1: #{tpu_custom_call.1} parent=0
    #allocation4 [shape = 'u8[8192]{0}', space=vmem, size = 0x2000, scoped, tag = 'input window, operand 0, single buffered']
    #allocation5 [shape = 's32[1]{0}', space=sflag, size = 0x4, scoped, tag = 'scoped memory for tpu_custom_call.1']
    #allocation6 [shape = 's32[1]{0}', space=sflag, size = 0x4, scoped, tag = 'scoped memory for tpu_custom_call.1']
    #allocation7 [shape = 'u8[8192]{0}', space=vmem, size = 0x2000, scoped, tag = 'input window, operand 1, single buffered']
    #allocation8 [shape = 's32[1]{0}', space=sflag, size = 0x4, scoped, tag = 'scoped memory for tpu_custom_call.1']
    #allocation9 [shape = 'u8[65536]{0}', space=vmem, size = 0x10000, scoped, tag = 'input window, operand 2, single buffered']
    #allocation10 [shape = 'u8[65536]{0}', space=vmem, size = 0x10000, scoped, tag = 'input window, operand 3, single buffered']
    #allocation11 [shape = 's32[1]{0}', space=sflag, size = 0x4, scoped, tag = 'scoped memory for tpu_custom_call.1']
    #allocation12 [shape = 'u8[8192]{0}', space=vmem, size = 0x2000, scoped, tag = 'output window, operand 0, single buffered']
    #allocation13 [shape = 'u8[8192]{0}', space=vmem, size = 0x2000, scoped, tag = 'output window, operand 1, single buffered']
    #allocation14 [shape = 's32[1]{0}', space=sflag, size = 0x4, scoped, tag = 'scoped memory for tpu_custom_call.1']
    %11 = vsyncpa [#allocation5], 0
    %12 = vsyncpa [#allocation8], 0
    %13 = vsyncpa [#allocation11], 0
    %14 = vsyncpa [#allocation6], 0
    %15 = vsyncpa [#allocation14], 0
    // Predicated region
    $region2: #{tpu_custom_call.1} parent=1 // pred_check
      _
    $region3: #{tpu_custom_call.1} parent=1 // pred_check_branch
      %17 = sbr.rel (0) target = $region5
    $region4: #{tpu_custom_call.1} parent=1 // pred_region
      %19 = vsyncadd [#allocation5], 0
      %s20 = sshll.u32 %s0, 4
      %s21 = int_to_ptr.hbm [resolvable:$true] %s20
      %s22 = sshll.u32 [#allocation4], 4
      %s23 = int_to_ptr.vmem [resolvable:$true] %s22
      %28 = dma.hbm_to_vmem [thread:$0]  %s21, 256, %s23, [#allocation5], 128, 128, 8
    $region5: #{tpu_custom_call.1} parent=1 // pred_fallthru
      _
    // Predicated region
    $region6: #{tpu_custom_call.1} parent=1 // pred_check
      _
    $region7: #{tpu_custom_call.1} parent=1 // pred_check_branch
      %30 = sbr.rel (0) target = $region9
    $region8: #{tpu_custom_call.1} parent=1 // pred_region
      %32 = vsyncadd [#allocation8], 0
      %s33 = sshll.u32 %s1, 4
      %s34 = int_to_ptr.hbm [resolvable:$true] %s33
      %s35 = sshll.u32 [#allocation7], 4
      %s36 = int_to_ptr.vmem [resolvable:$true] %s35
      %41 = dma.hbm_to_vmem [thread:$0]  %s34, 256, %s36, [#allocation8], 128, 128, 8
    $region9: #{tpu_custom_call.1} parent=1 // pred_fallthru
      _
    // Predicated region
    $region10: #{tpu_custom_call.1} parent=1 // pred_check
      _
    $region11: #{tpu_custom_call.1} parent=1 // pred_check_branch
      %43 = sbr.rel (0) target = $region13
    $region12: #{tpu_custom_call.1} parent=1 // pred_region
      %45 = vsyncadd [#allocation8], 0
      %s46 = sshll.u32 %s2, 4
      %s47 = int_to_ptr.hbm [resolvable:$true] %s46
      %s48 = sshll.u32 [#allocation9], 4
      %s49 = int_to_ptr.vmem [resolvable:$true] %s48
      %54 = dma.hbm_to_vmem [thread:$0]  %s47, 2048, %s49, [#allocation8], 128, 128, 8
    $region13: #{tpu_custom_call.1} parent=1 // pred_fallthru
      _
    // Predicated region
    $region14: #{tpu_custom_call.1} parent=1 // pred_check
      _
    $region15: #{tpu_custom_call.1} parent=1 // pred_check_branch
      %56 = sbr.rel (0) target = $region17
    $region16: #{tpu_custom_call.1} parent=1 // pred_region
      %58 = vsyncadd [#allocation11], 0
      %s59 = sshll.u32 %s3, 4
      %s60 = int_to_ptr.hbm [resolvable:$true] %s59
      %s61 = sshll.u32 [#allocation10], 4
      %s62 = int_to_ptr.vmem [resolvable:$true] %s61
      %67 = dma.hbm_to_vmem [thread:$0]  %s60, 2048, %s62, [#allocation11], 128, 128, 8
    $region17: #{tpu_custom_call.1} parent=1 // pred_fallthru
      _
    // Predicated region
    $region18: #{tpu_custom_call.1} parent=1 // pred_check
      _
    $region19: #{tpu_custom_call.1} parent=1 // pred_check_branch
      %69 = sbr.rel (0) target = $region21
    $region20: #{tpu_custom_call.1} parent=1 // pred_region
      %71 = dma.done [#allocation5], 256
    $region21: #{tpu_custom_call.1} parent=1 // pred_fallthru
      _
    // Predicated region
    $region22: #{tpu_custom_call.1} parent=1 // pred_check
      _
    $region23: #{tpu_custom_call.1} parent=1 // pred_check_branch
      %73 = sbr.rel (0) target = $region25
    $region24: #{tpu_custom_call.1} parent=1 // pred_region
      %75 = dma.done [#allocation8], 256
    $region25: #{tpu_custom_call.1} parent=1 // pred_fallthru
      _
    // Predicated region
    $region26: #{tpu_custom_call.1} parent=1 // pred_check
      _
    $region27: #{tpu_custom_call.1} parent=1 // pred_check_branch
      %77 = sbr.rel (0) target = $region29
    $region28: #{tpu_custom_call.1} parent=1 // pred_region
      %79 = dma.done [#allocation8], 2048
    $region29: #{tpu_custom_call.1} parent=1 // pred_fallthru
      _
    // Predicated region
    $region30: #{tpu_custom_call.1} parent=1 // pred_check
      _
    $region31: #{tpu_custom_call.1} parent=1 // pred_check_branch
      %81 = sbr.rel (0) target = $region33
    $region32: #{tpu_custom_call.1} parent=1 // pred_region
      %83 = dma.done [#allocation11], 2048
    $region33: #{tpu_custom_call.1} parent=1 // pred_fallthru
      _
    %p84 = scmp.eq.s32.totalorder 0, 0
    // Predicated region
    $region34: #{tpu_custom_call.1} parent=1 // pred_check
      %p85 = pneg %p84
    $region35: #{tpu_custom_call.1} parent=1 // pred_check_branch
      %87 = sbr.rel (%p85) target = $region37
    $region36: #{tpu_custom_call.1} parent=1 // pred_region
      %88 = vst [vmem:[#allocation2] sm:$0xff] 0.0
      %89 = vst [vmem:[#allocation2 + $0x8] sm:$0xff] 0.0
      %90 = vst [vmem:[#allocation3] sm:$0xff] 0.0
      %91 = vst [vmem:[#allocation3 + $0x8] sm:$0xff] 0.0
    $region37: #{tpu_custom_call.1} parent=1 // pred_fallthru
      _
    %v92 = vld [vmem:[#allocation4] sm:$0xff]
    %v93 = vld [vmem:[#allocation4 + $0x8] sm:$0xff]
    %v94 = vld [vmem:[#allocation7] sm:$0xff]
    %v95 = vld [vmem:[#allocation7 + $0x8] sm:$0xff]
    %v96 = vld [vmem:[#allocation9] sm:$0xff]
    %v97 = vld [vmem:[#allocation9 + $0x8] sm:$0xff]
    %v98 = vld [vmem:[#allocation9 + $0x10] sm:$0xff]
    %v99 = vld [vmem:[#allocation9 + $0x18] sm:$0xff]
    %v100 = vld [vmem:[#allocation9 + $0x20] sm:$0xff]
    %v101 = vld [vmem:[#allocation9 + $0x28] sm:$0xff]
    %v102 = vld [vmem:[#allocation9 + $0x30] sm:$0xff]
    %v103 = vld [vmem:[#allocation9 + $0x38] sm:$0xff]
    %v104 = vld [vmem:[#allocation9 + $0x40] sm:$0xff]
    %v105 = vld [vmem:[#allocation9 + $0x48] sm:$0xff]
    %v106 = vld [vmem:[#allocation9 + $0x50] sm:$0xff]
    %v107 = vld [vmem:[#allocation9 + $0x58] sm:$0xff]
    %v108 = vld [vmem:[#allocation9 + $0x60] sm:$0xff]
    %v109 = vld [vmem:[#allocation9 + $0x68] sm:$0xff]
    %v110 = vld [vmem:[#allocation9 + $0x70] sm:$0xff]
    %v111 = vld [vmem:[#allocation9 + $0x78] sm:$0xff]
    %v112 = vld [vmem:[#allocation10] sm:$0xff]
    %v113 = vld [vmem:[#allocation10 + $0x8] sm:$0xff]
    %v114 = vld [vmem:[#allocation10 + $0x10] sm:$0xff]
    %v115 = vld [vmem:[#allocation10 + $0x18] sm:$0xff]
    %v116 = vld [vmem:[#allocation10 + $0x20] sm:$0xff]
    %v117 = vld [vmem:[#allocation10 + $0x28] sm:$0xff]
    %v118 = vld [vmem:[#allocation10 + $0x30] sm:$0xff]
    %v119 = vld [vmem:[#allocation10 + $0x38] sm:$0xff]
    %v120 = vld [vmem:[#allocation10 + $0x40] sm:$0xff]
    %v121 = vld [vmem:[#allocation10 + $0x48] sm:$0xff]
    %v122 = vld [vmem:[#allocation10 + $0x50] sm:$0xff]
    %v123 = vld [vmem:[#allocation10 + $0x58] sm:$0xff]
    %v124 = vld [vmem:[#allocation10 + $0x60] sm:$0xff]
    %v125 = vld [vmem:[#allocation10 + $0x68] sm:$0xff]
    %v126 = vld [vmem:[#allocation10 + $0x70] sm:$0xff]
    %v127 = vld [vmem:[#allocation10 + $0x78] sm:$0xff]
    %v128 = vmax.f32 %v92, 0.0
    %v129 = vmax.f32 %v93, 0.0
    %v130 = vmin.f32 %v92, 0.0
    %v131 = vmin.f32 %v93, 0.0
    %v132 = vmin.f32 %v94, 0.0
    %v133 = vmin.f32 %v95, 0.0
    %v134 = vmax.f32 %v94, 0.0
    %v135 = vmax.f32 %v95, 0.0
    %v136 = vld [vmem:[#allocation2] sm:$0xff]
    %v137 = vld [vmem:[#allocation2 + $0x8] sm:$0xff]
    %138 = vmatpush.msra.mxu0 %v111
    %139 = vmatpush.msra.mxu0 %v110
    %140 = vmatpush.msra.mxu0 %v109
    %141 = vmatpush.msra.mxu0 %v108
    %142 = vmatpush.msra.mxu0 %v107
    %143 = vmatpush.msra.mxu0 %v106
    %144 = vmatpush.msra.mxu0 %v105
    %145 = vmatpush.msra.mxu0 %v104
    %146 = vmatpush.msra.mxu0 %v103
    %147 = vmatpush.msra.mxu0 %v102
    %148 = vmatpush.msra.mxu0 %v101
    %149 = vmatpush.msra.mxu0 %v100
    %150 = vmatpush.msra.mxu0 %v99
    %151 = vmatpush.msra.mxu0 %v98
    %152 = vmatpush.msra.mxu0 %v97
    %153 = vmatpush.msra.mxu0 %v96
    %154 = vmatmul.f32.gmra.mxu0 %v128
    %v155 = vpop.f32.mrf.mxu0
    %v156 = vadd.f32 0.0, %v155
    %157 = vmatmul.f32.gmra.mxu0 %v129
    %v158 = vpop.f32.mrf.mxu0
    %v159 = vadd.f32 0.0, %v158
    %160 = vdwg.mxu0
    %161 = vmatpush.msra.mxu0 %v127
    %162 = vmatpush.msra.mxu0 %v126
    %163 = vmatpush.msra.mxu0 %v125
    %164 = vmatpush.msra.mxu0 %v124
    %165 = vmatpush.msra.mxu0 %v123
    %166 = vmatpush.msra.mxu0 %v122
    %167 = vmatpush.msra.mxu0 %v121
    %168 = vmatpush.msra.mxu0 %v120
    %169 = vmatpush.msra.mxu0 %v119
    %170 = vmatpush.msra.mxu0 %v118
    %171 = vmatpush.msra.mxu0 %v117
    %172 = vmatpush.msra.mxu0 %v116
    %173 = vmatpush.msra.mxu0 %v115
    %174 = vmatpush.msra.mxu0 %v114
    %175 = vmatpush.msra.mxu0 %v113
    %176 = vmatpush.msra.mxu0 %v112
    %177 = vmatmul.f32.gmra.mxu0 %v130
    %v178 = vpop.f32.mrf.mxu0
    %v179 = vadd.f32 %v156, %v178
    %180 = vmatmul.f32.gmra.mxu0 %v131
    %v181 = vpop.f32.mrf.mxu0
    %v182 = vadd.f32 %v159, %v181
    %183 = vdwg.mxu0
    %v184 = vadd.f32 %v136, %v179
    %v185 = vadd.f32 %v137, %v182
    %186 = vst [vmem:[#allocation2] sm:$0xff] %v184
    %187 = vst [vmem:[#allocation2 + $0x8] sm:$0xff] %v185
    %v188 = vld [vmem:[#allocation3] sm:$0xff]
    %v189 = vld [vmem:[#allocation3 + $0x8] sm:$0xff]
    %190 = vmatpush.msra.mxu0 %v111
    %191 = vmatpush.msra.mxu0 %v110
    %192 = vmatpush.msra.mxu0 %v109
    %193 = vmatpush.msra.mxu0 %v108
    %194 = vmatpush.msra.mxu0 %v107
    %195 = vmatpush.msra.mxu0 %v106
    %196 = vmatpush.msra.mxu0 %v105
    %197 = vmatpush.msra.mxu0 %v104
    %198 = vmatpush.msra.mxu0 %v103
    %199 = vmatpush.msra.mxu0 %v102
    %200 = vmatpush.msra.mxu0 %v101
    %201 = vmatpush.msra.mxu0 %v100
    %202 = vmatpush.msra.mxu0 %v99
    %203 = vmatpush.msra.mxu0 %v98
    %204 = vmatpush.msra.mxu0 %v97
    %205 = vmatpush.msra.mxu0 %v96
    %206 = vmatmul.f32.gmra.mxu0 %v132
    %v207 = vpop.f32.mrf.mxu0
    %v208 = vadd.f32 0.0, %v207
    %209 = vmatmul.f32.gmra.mxu0 %v133
    %v210 = vpop.f32.mrf.mxu0
    %v211 = vadd.f32 0.0, %v210
    %212 = vdwg.mxu0
    %213 = vmatpush.msra.mxu0 %v127
    %214 = vmatpush.msra.mxu0 %v126
    %215 = vmatpush.msra.mxu0 %v125
    %216 = vmatpush.msra.mxu0 %v124
    %217 = vmatpush.msra.mxu0 %v123
    %218 = vmatpush.msra.mxu0 %v122
    %219 = vmatpush.msra.mxu0 %v121
    %220 = vmatpush.msra.mxu0 %v120
    %221 = vmatpush.msra.mxu0 %v119
    %222 = vmatpush.msra.mxu0 %v118
    %223 = vmatpush.msra.mxu0 %v117
    %224 = vmatpush.msra.mxu0 %v116
    %225 = vmatpush.msra.mxu0 %v115
    %226 = vmatpush.msra.mxu0 %v114
    %227 = vmatpush.msra.mxu0 %v113
    %228 = vmatpush.msra.mxu0 %v112
    %229 = vmatmul.f32.gmra.mxu0 %v134
    %v230 = vpop.f32.mrf.mxu0
    %v231 = vadd.f32 %v208, %v230
    %232 = vmatmul.f32.gmra.mxu0 %v135
    %v233 = vpop.f32.mrf.mxu0
    %v234 = vadd.f32 %v211, %v233
    %235 = vdwg.mxu0
    %v236 = vadd.f32 %v188, %v231
    %v237 = vadd.f32 %v189, %v234
    %238 = vst [vmem:[#allocation3] sm:$0xff] %v236
    %239 = vst [vmem:[#allocation3 + $0x8] sm:$0xff] %v237
    // Predicated region
    $region38: #{tpu_custom_call.1} parent=1 // pred_check
      %p240 = pneg %p84
    $region39: #{tpu_custom_call.1} parent=1 // pred_check_branch
      %242 = sbr.rel (%p240) target = $region41
    $region40: #{tpu_custom_call.1} parent=1 // pred_region
      %v243 = vld [vmem:[#allocation2] sm:$0xff]
      %v244 = vld [vmem:[#allocation2 + $0x8] sm:$0xff]
      %245 = vst [vmem:[#allocation12] sm:$0xff] %v243
      %246 = vst [vmem:[#allocation12 + $0x8] sm:$0xff] %v244
      %v247 = vld [vmem:[#allocation3] sm:$0xff]
      %v248 = vld [vmem:[#allocation3 + $0x8] sm:$0xff]
      %249 = vst [vmem:[#allocation13] sm:$0xff] %v247
      %250 = vst [vmem:[#allocation13 + $0x8] sm:$0xff] %v248
    $region41: #{tpu_custom_call.1} parent=1 // pred_fallthru
      _
    // Predicated region
    $region42: #{tpu_custom_call.1} parent=1 // pred_check
      _
    $region43: #{tpu_custom_call.1} parent=1 // pred_check_branch
      %252 = sbr.rel (0) target = $region45
    $region44: #{tpu_custom_call.1} parent=1 // pred_region
      %254 = vsyncadd [#allocation6], 0
      %s255 = sshll.u32 [#allocation12], 4
      %s256 = int_to_ptr.vmem [resolvable:$true] %s255
      %s257 = sshll.u32 %s4, 4
      %s258 = int_to_ptr.hbm [resolvable:$true] %s257
      %263 = dma.vmem_to_hbm [thread:$0]  %s256, 256, %s258, [#allocation6], 128, 128, 8
    $region45: #{tpu_custom_call.1} parent=1 // pred_fallthru
      _
    // Predicated region
    $region46: #{tpu_custom_call.1} parent=1 // pred_check
      _
    $region47: #{tpu_custom_call.1} parent=1 // pred_check_branch
      %265 = sbr.rel (0) target = $region49
    $region48: #{tpu_custom_call.1} parent=1 // pred_region
      %267 = vsyncadd [#allocation14], 0
      %s268 = sshll.u32 [#allocation13], 4
      %s269 = int_to_ptr.vmem [resolvable:$true] %s268
      %s270 = sshll.u32 %s5, 4
      %s271 = int_to_ptr.hbm [resolvable:$true] %s270
      %276 = dma.vmem_to_hbm [thread:$0]  %s269, 256, %s271, [#allocation14], 128, 128, 8
    $region49: #{tpu_custom_call.1} parent=1 // pred_fallthru
      _
    // Predicated region
    $region50: #{tpu_custom_call.1} parent=1 // pred_check
      _
    $region51: #{tpu_custom_call.1} parent=1 // pred_check_branch
      %278 = sbr.rel (0) target = $region53
    $region52: #{tpu_custom_call.1} parent=1 // pred_region
      %280 = dma.done [#allocation6], 256
    $region53: #{tpu_custom_call.1} parent=1 // pred_fallthru
      _
    // Predicated region
    $region54: #{tpu_custom_call.1} parent=1 // pred_check
      _
    $region55: #{tpu_custom_call.1} parent=1 // pred_check_branch
      %282 = sbr.rel (0) target = $region57
    $region56: #{tpu_custom_call.1} parent=1 // pred_region
      %284 = dma.done [#allocation14], 256
    $region57: #{tpu_custom_call.1} parent=1 // pred_fallthru
      _
    %285 = vsyncpa [#allocation5], 1
    %286 = vsyncpa [#allocation8], 1
    %287 = vsyncpa [#allocation11], 1
    %288 = vsyncpa [#allocation6], 1
    %289 = vsyncpa [#allocation14], 1

</llo_original>
